<compile_context>
chip_gen: v6e
topology: v6e:2x2x1
jax: 0.10.0
libtpu: 0.0.40
codegen_flags: <defaults>
</compile_context>

<pallas_src>
import jax
import jax.numpy as jnp
from jax.experimental import pallas as pl
from jax.experimental.pallas import tpu as pltpu


# ------------------------------ small helpers ---------------------------------

def _round_up(x, m):
    return ((x + m - 1) // m) * m


def _vmem_budgets():
    """(adj row-tile byte budget, vmem_limit_bytes) derived from physical VMEM."""
    try:
        cap = int(pltpu.get_tpu_info().vmem_capacity_bytes)
    except Exception:
        cap = 64 << 20                       # conservative (v7x-class) default
    if cap <= (64 << 20):                    # v7x: 64 MiB per TensorCore
        return 8 << 20, 48 << 20
    return 16 << 20, 96 << 20                # v5e / v6e: 128 MiB physical


_ADJ_TILE_BUDGET, _VMEM_LIMIT = _vmem_budgets()


def _choose_row_tile(n, row_bytes, budget_bytes):
    """adj row-tile height (multiple of 16, bf16 sublane packing) + padded row count."""
    cap = _round_up(n, 16)
    candidates = [t for t in (1024, 512, 256, 128, 64, 32, 16) if t <= cap]
    for tm in candidates:                    # prefer exact tiling (no padding)
        if n % tm == 0 and tm * row_bytes <= budget_bytes:
            return tm, n
    for tm in candidates:                    # otherwise zero-pad rows up to a multiple
        if tm * row_bytes <= budget_bytes:
            return tm, _round_up(n, tm)
    return n, n                              # degenerate fallback (unreachable in practice)


# ------------------------------- Pallas kernel --------------------------------

def _layer_fused_kernel(src_ref, dst_ref,              # scalar-prefetch (SMEM)
                        xw_ref, adj_ref, wfold_ref,    # inputs (VMEM)
                        out_ref,                       # output (VMEM)
                        z_ref, zi_ref, zj_ref):        # scratch (VMEM)
    """One grid step: encode one row tile of z; on the last step, run chunked decode."""
    i = pl.program_id(0)
    tm = adj_ref.shape[0]                              # adj row-tile height (static)

    # ---- encode tile: z[i*tm:(i+1)*tm, :] = adj_tile @ (x @ W)   (xW hoisted, bf16 MXU) ----
    z_tile = jnp.dot(adj_ref[...], xw_ref[...], preferred_element_type=jnp.float32)
    row0 = pl.multiple_of(i * tm, tm)
    z_ref[pl.ds(row0, tm), :] = z_tile

    # ---- decode (fused): only once all of z has been produced ----
    @pl.when(i == pl.num_programs(0) - 1)
    def _decode():
        e_pad = out_ref.shape[0]
        chunk = zi_ref.shape[0]
        n_chunks = e_pad // chunk

        # Folded decode weights: rows = [W2a@W3a, W2b@W3a, W3b], each (1, D).
        va = wfold_ref[0:1, :]
        vb = wfold_ref[1:2, :]
        vc = wfold_ref[2:3, :]

        @pl.loop(0, n_chunks)
        def _chunk(c):
            base = pl.multiple_of(c * chunk, chunk)

            # SMEM-indexed row gather of edge endpoints: O(E*D), no one-hot matmuls.
            def gather(k, carry):
                e = base + k
                s = src_ref[e]
                d = dst_ref[e]
                zi_ref[pl.ds(k, 1), :] = z_ref[pl.ds(s, 1), :]
                zj_ref[pl.ds(k, 1), :] = z_ref[pl.ds(d, 1), :]
                return carry
            jax.lax.fori_loop(0, chunk, gather, 0)

            zi = zi_ref[...]                                    # (chunk, D) f32
            zj = zj_ref[...]
            contrib = (jnp.maximum(zi, 0.0) * va
                       + jnp.maximum(zj, 0.0) * vb
                       + zi * zj * vc)                          # (chunk, D)
            logits = jnp.sum(contrib, axis=1, keepdims=True)    # (chunk, 1)
            out_ref[pl.ds(base, chunk), :] = jax.nn.sigmoid(logits)


# ------------------------------- JAX wrappers ----------------------------------

def fold_decode_weights(w_two, w_three, d_out):
    """Exact fold of W_three's first half into W_two (done ONCE at setup time)."""
    w2a, w2b = w_two[:d_out, :], w_two[d_out:, :]
    w3a, w3b = w_three[:d_out, :], w_three[d_out:, :]
    va = (w2a @ w3a).T            # (1, D)
    vb = (w2b @ w3a).T            # (1, D)
    vc = w3b.T                    # (1, D)
    return jnp.concatenate([va, vb, vc], axis=0).astype(jnp.float32)   # (3, D)


@jax.jit
def layer_forward(x, adj, weight, w_fold, train_edges, train_false_edges):
    """Full Layer.forward: sigmoid(decode(encode(x), concat(true, false)))."""
    n, d_in = x.shape
    d_out = weight.shape[1]

    edges = jnp.concatenate([train_edges, train_false_edges], axis=0).astype(jnp.int32)
    edges = jnp.clip(edges, 0, n - 1)        # direct VMEM row indexing has no OOB check
    e2 = edges.shape[0]

    # Decode chunking over E (bounds last-step VMEM / vreg pressure).
    chunk_e = min(512, _round_up(max(e2, 1), 128))
    e_pad = _round_up(e2, chunk_e)
    src = jnp.pad(edges[:, 0], (0, e_pad - e2))
    dst = jnp.pad(edges[:, 1], (0, e_pad - e2))

    # Hoist xW out of the per-tile loop (exact reassociation adj @ (x @ W)); feed the
    # big N x N adjacency stream to the MXU as bf16 with f32 accumulation.
    xw = jnp.dot(x.astype(jnp.float32), weight.astype(jnp.float32)).astype(jnp.bfloat16)
    adj_bf = adj.astype(jnp.bfloat16)

    tm, n_pad = _choose_row_tile(n, 2 * n, _ADJ_TILE_BUDGET)   # bf16 adj row = 2*n bytes
    if n_pad != n:
        adj_bf = jnp.pad(adj_bf, ((0, n_pad - n), (0, 0)))
    grid = (n_pad // tm,)

    out = pl.pallas_call(
        _layer_fused_kernel,
        out_shape=jax.ShapeDtypeStruct((e_pad, 1), jnp.float32),
        grid_spec=pltpu.PrefetchScalarGridSpec(
            num_scalar_prefetch=2,                               # src, dst -> SMEM
            grid=grid,
            in_specs=[
                pl.BlockSpec((n, d_out), lambda i, s, d: (0, 0)),    # xW (bf16), resident
                pl.BlockSpec((tm, n), lambda i, s, d: (i, 0)),       # adj row tile (bf16)
                pl.BlockSpec((3, d_out), lambda i, s, d: (0, 0)),    # folded decode weights
            ],
            out_specs=pl.BlockSpec((e_pad, 1), lambda i, s, d: (0, 0)),
            scratch_shapes=[
                pltpu.VMEM((n_pad, d_out), jnp.float32),             # full z, carried
                pltpu.VMEM((chunk_e, d_out), jnp.float32),           # gathered z[src]
                pltpu.VMEM((chunk_e, d_out), jnp.float32),           # gathered z[dst]
            ],
        ),
        compiler_params=pltpu.CompilerParams(
            # Last step's decode reads every z tile from scratch -> sequential axis.
            dimension_semantics=("arbitrary",),
            vmem_limit_bytes=_VMEM_LIMIT,
        ),
    )(src, dst, xw, adj_bf, w_fold.astype(jnp.float32))

    return out[:e2, :]


# ----------------------------- pure-JAX reference -------------------------------

def reference_forward(x, adj, weight, w_two, w_three, edges):
    z = adj @ (x @ weight)
    zi = z[edges[:, 0]]
    zj = z[edges[:, 1]]
    pair = jnp.maximum(jnp.concatenate([zi, zj], axis=1), 0.0) @ w_two
    logits = jnp.concatenate([pair, zi * zj], axis=1) @ w_three
    return jax.nn.sigmoid(logits)


# --------------------------- deterministic init ---------------------------------

def glorot_init(key, fan_in, fan_out):
    bound = jnp.sqrt(6.0 / (fan_in + fan_out))
    return jax.random.uniform(key, (fan_in, fan_out), jnp.float32, -bound, bound)


# ------------------------------------ main --------------------------------------

if __name__ == "__main__":
    N = 256            # number of graph nodes
    INPUT_DIM = 16
    OUTPUT_DIM = 32
    E = 8              # edges per edge-list (true / false)

    root = jax.random.PRNGKey(0)
    k_x, k_adj, k_w1, k_w2, k_w3, k_e1, k_e2 = jax.random.split(root, 7)

    x = 3.0 * jax.random.normal(k_x, (N, INPUT_DIM), jnp.float32)

    # Symmetric row-normalized adjacency (deterministic, ~10% density).
    a_raw = (jax.random.uniform(k_adj, (N, N)) > 0.9).astype(jnp.float32)
    a_sym = jnp.maximum(a_raw, a_raw.T) + jnp.eye(N, dtype=jnp.float32)
    adj = a_sym / jnp.sum(a_sym, axis=1, keepdims=True)

    params = {
        "weight":       glorot_init(k_w1, INPUT_DIM, OUTPUT_DIM),
        "weight_two":   glorot_init(k_w2, OUTPUT_DIM * 2, OUTPUT_DIM),
        "weight_three": glorot_init(k_w3, OUTPUT_DIM * 2, 1),
    }

    train_edges = jax.random.randint(k_e1, (E, 2), 0, N, jnp.int32)
    train_false_edges = jax.random.randint(k_e2, (E, 2), 0, N, jnp.int32)

    # One-time preparation (hoisted out of the per-call path).
    w_fold = fold_decode_weights(params["weight_two"], params["weight_three"], OUTPUT_DIM)

    out = layer_forward(x, adj, params["weight"], w_fold,
                        train_edges, train_false_edges)
    out = jax.block_until_ready(out)

    # Validate against the f32 pure-JAX reference (bf16 MXU operands -> small tol).
    edges = jnp.concatenate([train_edges, train_false_edges], axis=0)
    ref = reference_forward(x, adj, params["weight"], params["weight_two"],
                            params["weight_three"], edges)

    assert out.shape == (2 * E, 1), out.shape
    assert bool(jnp.all(jnp.isfinite(out)))
    assert bool(jnp.all((out >= 0.0) & (out <= 1.0)))
    assert bool(jnp.allclose(out, ref, atol=2e-2)), float(jnp.max(jnp.abs(out - ref)))
    print("KERNEL_OK")
</pallas_src>

<mosaic_0001>
module attributes {stable_mosaic.version = 11 : i64} {
  func.func @_layer_fused_kernel(%arg0: i32, %arg1: memref<128xi32, #tpu.memory_space<smem>>, %arg2: memref<128xi32, #tpu.memory_space<smem>>, %arg3: memref<256x32xbf16, #tpu.memory_space<vmem>>, %arg4: memref<256x256xbf16, #tpu.memory_space<vmem>>, %arg5: memref<3x32xf32, #tpu.memory_space<vmem>>, %arg6: memref<128x1xf32, #tpu.memory_space<vmem>>, %arg7: memref<256x32xf32, #tpu.memory_space<vmem>>, %arg8: memref<128x32xf32, #tpu.memory_space<vmem>>, %arg9: memref<128x32xf32, #tpu.memory_space<vmem>>) attributes {dimension_semantics = [#tpu.dimension_semantics<arbitrary>], iteration_bounds = array<i64: 1>, scalar_prefetch = 2 : i64, scratch_operands = 3 : i64, tpu.core_type = #tpu.core_type<tc>, window_params = [{pipeline_mode = #tpu.pipeline_mode<synchronous>, transform_indices = @transform_0, window_bounds = array<i64: 256, 32>}, {transform_indices = @transform_1, window_bounds = array<i64: 256, 256>}, {pipeline_mode = #tpu.pipeline_mode<synchronous>, transform_indices = @transform_2, window_bounds = array<i64: 3, 32>}, {pipeline_mode = #tpu.pipeline_mode<synchronous>, transform_indices = @transform_3, window_bounds = array<i64: 128, 1>}]} {
    %c0 = arith.constant 0 : index
    %c0_0 = arith.constant 0 : index
    %0 = vector.load %arg4[%c0, %c0_0] : memref<256x256xbf16, #tpu.memory_space<vmem>>, vector<256x256xbf16>
    %c0_1 = arith.constant 0 : index
    %c0_2 = arith.constant 0 : index
    %1 = vector.load %arg3[%c0_1, %c0_2] : memref<256x32xbf16, #tpu.memory_space<vmem>>, vector<256x32xbf16>
    %cst = arith.constant dense<0.000000e+00> : vector<256x32xf32>
    %2 = tpu.matmul %0, %1, %cst {dimension_numbers = #tpu.dot_dimension_numbers<[1], [0], [0], [1], [0, 0, 1, 1], [], []>} : vector<256x256xbf16>, vector<256x32xbf16>, vector<256x32xf32> -> vector<256x32xf32>
    %c256_i32 = arith.constant 256 : i32
    %3 = arith.muli %arg0, %c256_i32 : i32
    %4 = tpu.assume_multiple %3, 256 : i32
    %5 = arith.index_cast %4 : i32 to index
    %c0_3 = arith.constant 0 : index
    %6 = vector.load %arg7[%5, %c0_3] : memref<256x32xf32, #tpu.memory_space<vmem>>, vector<256x32xf32>
    tpu.vector_store %arg7[%5, %c0_3], %2 {strides = array<i32>} : memref<256x32xf32, #tpu.memory_space<vmem>>, vector<256x32xf32>,
    %c0_i32 = arith.constant 0 : i32
    %7 = arith.cmpi eq, %arg0, %c0_i32 : i32
    %8 = arith.extui %7 : i1 to i32
    %c0_i32_4 = arith.constant 0 : i32
    %9 = arith.cmpi ne, %8, %c0_i32_4 : i32
    scf.if %9 {
      %c0_5 = arith.constant 0 : index
      %c0_6 = arith.constant 0 : index
      %10 = vector.load %arg5[%c0_5, %c0_6] : memref<3x32xf32, #tpu.memory_space<vmem>>, vector<1x32xf32>
      %c1 = arith.constant 1 : index
      %c0_7 = arith.constant 0 : index
      %11 = vector.load %arg5[%c1, %c0_7] : memref<3x32xf32, #tpu.memory_space<vmem>>, vector<1x32xf32>
      %c2 = arith.constant 2 : index
      %c0_8 = arith.constant 0 : index
      %12 = vector.load %arg5[%c2, %c0_8] : memref<3x32xf32, #tpu.memory_space<vmem>>, vector<1x32xf32>
      %c0_i32_9 = arith.constant 0 : i32
      %c1_i32 = arith.constant 1 : i32
      %13 = arith.muli %c0_i32_9, %c1_i32 : i32
      %c0_i32_10 = arith.constant 0 : i32
      %14 = arith.addi %c0_i32_10, %13 : i32
      %c128_i32 = arith.constant 128 : i32
      %15 = arith.muli %14, %c128_i32 : i32
      %16 = tpu.assume_multiple %15, 128 : i32
      %c0_i32_11 = arith.constant 0 : i32
      %c128_i32_12 = arith.constant 128 : i32
      %17 = arith.addi %c0_i32_11, %c128_i32_12 : i32
      %c1_i32_13 = arith.constant 1 : i32
      scf.for %arg10 = %c0_i32_11 to %17 step %c1_i32_13  : i32 {
        %42 = arith.addi %16, %arg10 : i32
        %43 = arith.index_cast %42 : i32 to index
        %44 = memref.load %arg1[%43] : memref<128xi32, #tpu.memory_space<smem>>
        %45 = arith.index_cast %42 : i32 to index
        %46 = memref.load %arg2[%45] : memref<128xi32, #tpu.memory_space<smem>>
        %47 = arith.index_cast %44 : i32 to index
        %c0_25 = arith.constant 0 : index
        %48 = vector.load %arg7[%47, %c0_25] : memref<256x32xf32, #tpu.memory_space<vmem>>, vector<1x32xf32>
        %49 = arith.index_cast %arg10 : i32 to index
        %c0_26 = arith.constant 0 : index
        %50 = vector.load %arg8[%49, %c0_26] : memref<128x32xf32, #tpu.memory_space<vmem>>, vector<1x32xf32>
        tpu.vector_store %arg8[%49, %c0_26], %48 {strides = array<i32>} : memref<128x32xf32, #tpu.memory_space<vmem>>, vector<1x32xf32>,
        %51 = arith.index_cast %46 : i32 to index
        %c0_27 = arith.constant 0 : index
        %52 = vector.load %arg7[%51, %c0_27] : memref<256x32xf32, #tpu.memory_space<vmem>>, vector<1x32xf32>
        %53 = arith.index_cast %arg10 : i32 to index
        %c0_28 = arith.constant 0 : index
        %54 = vector.load %arg9[%53, %c0_28] : memref<128x32xf32, #tpu.memory_space<vmem>>, vector<1x32xf32>
        tpu.vector_store %arg9[%53, %c0_28], %52 {strides = array<i32>} : memref<128x32xf32, #tpu.memory_space<vmem>>, vector<1x32xf32>,
      }
      %c128_i32_14 = arith.constant 128 : i32
      %c0_15 = arith.constant 0 : index
      %c0_16 = arith.constant 0 : index
      %18 = vector.load %arg8[%c0_15, %c0_16] : memref<128x32xf32, #tpu.memory_space<vmem>>, vector<128x32xf32>
      %c0_17 = arith.constant 0 : index
      %c0_18 = arith.constant 0 : index
      %19 = vector.load %arg9[%c0_17, %c0_18] : memref<128x32xf32, #tpu.memory_space<vmem>>, vector<128x32xf32>
      %cst_19 = arith.constant 0.000000e+00 : f32
      %20 = vector.broadcast %cst_19 : f32 to vector<128x32xf32>
      %21 = arith.maximumf %18, %20 : vector<128x32xf32>
      %22 = vector.broadcast %10 : vector<1x32xf32> to vector<128x32xf32>
      %23 = arith.mulf %21, %22 : vector<128x32xf32>
      %cst_20 = arith.constant 0.000000e+00 : f32
      %24 = vector.broadcast %cst_20 : f32 to vector<128x32xf32>
      %25 = arith.maximumf %19, %24 : vector<128x32xf32>
      %26 = vector.broadcast %11 : vector<1x32xf32> to vector<128x32xf32>
      %27 = arith.mulf %25, %26 : vector<128x32xf32>
      %28 = arith.addf %23, %27 : vector<128x32xf32>
      %29 = arith.mulf %18, %19 : vector<128x32xf32>
      %30 = vector.broadcast %12 : vector<1x32xf32> to vector<128x32xf32>
      %31 = arith.mulf %29, %30 : vector<128x32xf32>
      %32 = arith.addf %28, %31 : vector<128x32xf32>
      %cst_21 = arith.constant dense<0.000000e+00> : vector<128xf32>
      %33 = vector.multi_reduction <add>, %32, %cst_21 [1] : vector<128x32xf32> to vector<128xf32>
      %34 = vector.shape_cast %33 : vector<128xf32> to vector<128x1xf32>
      %35 = arith.negf %34 : vector<128x1xf32>
      %36 = math.exp %35 : vector<128x1xf32>
      %cst_22 = arith.constant 1.000000e+00 : f32
      %37 = vector.broadcast %cst_22 : f32 to vector<128x1xf32>
      %38 = arith.addf %37, %36 : vector<128x1xf32>
      %39 = arith.divf %37, %38 : vector<128x1xf32>
      %40 = arith.index_cast %16 : i32 to index
      %c0_23 = arith.constant 0 : index
      %41 = vector.load %arg6[%40, %c0_23] : memref<128x1xf32, #tpu.memory_space<vmem>>, vector<128x1xf32>
      tpu.vector_store %arg6[%40, %c0_23], %39 {strides = array<i32>} : memref<128x1xf32, #tpu.memory_space<vmem>>, vector<128x1xf32>,
      %c1_i32_24 = arith.constant 1 : i32
    } else {
    }
    return
  }
  func.func @transform_0(%arg0: i32, %arg1: memref<128xi32, #tpu.memory_space<smem>>, %arg2: memref<128xi32, #tpu.memory_space<smem>>) -> (i32, i32) {
    %c0_i32 = arith.constant 0 : i32
    %c0_i32_0 = arith.constant 0 : i32
    %c0_i32_1 = arith.constant 0 : i32
    return %c0_i32, %c0_i32_0 : i32, i32
  }
  func.func @transform_1(%arg0: i32, %arg1: memref<128xi32, #tpu.memory_space<smem>>, %arg2: memref<128xi32, #tpu.memory_space<smem>>) -> (i32, i32) {
    %c0_i32 = arith.constant 0 : i32
    %c0_i32_0 = arith.constant 0 : i32
    return %arg0, %c0_i32 : i32, i32
  }
  func.func @transform_2(%arg0: i32, %arg1: memref<128xi32, #tpu.memory_space<smem>>, %arg2: memref<128xi32, #tpu.memory_space<smem>>) -> (i32, i32) {
    %c0_i32 = arith.constant 0 : i32
    %c0_i32_0 = arith.constant 0 : i32
    %c0_i32_1 = arith.constant 0 : i32
    return %c0_i32, %c0_i32_0 : i32, i32
  }
  func.func @transform_3(%arg0: i32, %arg1: memref<128xi32, #tpu.memory_space<smem>>, %arg2: memref<128xi32, #tpu.memory_space<smem>>) -> (i32, i32) {
    %c0_i32 = arith.constant 0 : i32
    %c0_i32_0 = arith.constant 0 : i32
    %c0_i32_1 = arith.constant 0 : i32
    return %c0_i32, %c0_i32_0 : i32, i32
  }
}

</mosaic_0001>

<llo_original>
// kernel: layer_forward.1
$region0: #{layer_forward.1}
  #allocation0 [shape = 'u32[]', space=smem, size = 0x4, offset = 0x4, fixed_abs, tag = 'smem constant byte address 0x4 - core index']
  #allocation1 [shape = 'u32[144,128]{1,0:T(1,128)}', space=vmem, size = 0x12000, scoped, tag = 'internal scratch']
  #allocation2 [shape = 'f32[256,32]{1,0:T(8,128)}', space=vmem, size = 0x20000, scoped, tag = 'scratch operand']
  #allocation3 [shape = 'f32[128,32]{1,0:T(8,128)}', space=vmem, size = 0x10000, scoped, tag = 'scratch operand']
  #allocation4 [shape = 'f32[128,32]{1,0:T(8,128)}', space=vmem, size = 0x10000, scoped, tag = 'scratch operand']
  #allocation5 [shape = 's32[1]{0}', space=sflag, size = 0x4, scoped, tag = 'scoped memory for layer_forward.1']
  #allocation6 [shape = 'u8[512]{0}', space=smem, size = 0x200, scoped, tag = 'prefetched SMEM operand 0']
  #allocation7 [shape = 'u8[512]{0}', space=smem, size = 0x200, scoped, tag = 'prefetched SMEM operand 1']
  %s0 = inlined_call_operand.vmem [shape: s32[128], index: 0, kind: input, shape index: {}]
  %s1 = inlined_call_operand.vmem [shape: s32[128], index: 1, kind: input, shape index: {}]
  %s2 = inlined_call_operand.vmem [shape: bf16[256,32], index: 2, kind: input, shape index: {}]
  %s3 = inlined_call_operand.vmem [shape: bf16[256,256], index: 3, kind: input, shape index: {}]
  %s4 = inlined_call_operand.vmem [shape: f32[3,32], index: 4, kind: input, shape index: {}]
  %s5 = inlined_call_operand.vmem [shape: f32[128,1], index: 5, kind: output, shape index: {}]
  %s6 = sld [smem:[#allocation0]]
  $region33: #{layer_forward.1} parent=0
    _
  %s8 = ssub.s32 1, %s6
  %s9 = scalar_select 0, %s8, %s6
  %s10 = sshll.u32 %s0, 4
  %s11 = int_to_ptr.vmem [resolvable:$true] %s10
  %13 = dma.vmem_to_smem %s11, 16, [#allocation6], [#allocation5]
  %s14 = sshll.u32 %s1, 4
  %s15 = int_to_ptr.vmem [resolvable:$true] %s14
  %17 = dma.vmem_to_smem %s15, 16, [#allocation7], [#allocation5]
  %18 = dma.done [#allocation5], 32
  %19 = sfence
  // Predicated region
  $region2: #{layer_forward.1} parent=0 // pred_check
    _
  $region3: #{layer_forward.1} parent=0 // pred_check_branch
    %21 = sbr.rel (0) target = $region5
  $region4: #{layer_forward.1} parent=0 // pred_region
    _
  $region5: #{layer_forward.1} parent=0 // pred_fallthru
    _
  // Predicated region
  $region6: #{layer_forward.1} parent=0 // pred_check
    _
  $region7: #{layer_forward.1} parent=0 // pred_check_branch
    %23 = sbr.rel (0) target = $region9
  $region8: #{layer_forward.1} parent=0 // pred_region
    _
  $region9: #{layer_forward.1} parent=0 // pred_fallthru
    _
  // Predicated region
  $region10: #{layer_forward.1} parent=0 // pred_check
    _
  $region11: #{layer_forward.1} parent=0 // pred_check_branch
    %25 = sbr.rel (0) target = $region13
  $region12: #{layer_forward.1} parent=0 // pred_region
    _
  $region13: #{layer_forward.1} parent=0 // pred_fallthru
    _
  %v27 = vld [vmem:[%s3] sm:$0xff]
  %v28 = vld [vmem:[%s3 + $0x8] sm:$0xff]
  %v29 = vld [vmem:[%s3 + $0x10] sm:$0xff]
  %v30 = vld [vmem:[%s3 + $0x18] sm:$0xff]
  %v31 = vld [vmem:[%s3 + $0x20] sm:$0xff]
  %v32 = vld [vmem:[%s3 + $0x28] sm:$0xff]
  %v33 = vld [vmem:[%s3 + $0x30] sm:$0xff]
  %v34 = vld [vmem:[%s3 + $0x38] sm:$0xff]
  %v35 = vld [vmem:[%s3 + $0x40] sm:$0xff]
  %v36 = vld [vmem:[%s3 + $0x48] sm:$0xff]
  %v37 = vld [vmem:[%s3 + $0x50] sm:$0xff]
  %v38 = vld [vmem:[%s3 + $0x58] sm:$0xff]
  %v39 = vld [vmem:[%s3 + $0x60] sm:$0xff]
  %v40 = vld [vmem:[%s3 + $0x68] sm:$0xff]
  %v41 = vld [vmem:[%s3 + $0x70] sm:$0xff]
  %v42 = vld [vmem:[%s3 + $0x78] sm:$0xff]
  %v43 = vld [vmem:[%s3 + $0x80] sm:$0xff]
  %v44 = vld [vmem:[%s3 + $0x88] sm:$0xff]
  %v45 = vld [vmem:[%s3 + $0x90] sm:$0xff]
  %v46 = vld [vmem:[%s3 + $0x98] sm:$0xff]
  %v47 = vld [vmem:[%s3 + $0xa0] sm:$0xff]
  %v48 = vld [vmem:[%s3 + $0xa8] sm:$0xff]
  %v49 = vld [vmem:[%s3 + $0xb0] sm:$0xff]
  %v50 = vld [vmem:[%s3 + $0xb8] sm:$0xff]
  %v51 = vld [vmem:[%s3 + $0xc0] sm:$0xff]
  %v52 = vld [vmem:[%s3 + $0xc8] sm:$0xff]
  %v53 = vld [vmem:[%s3 + $0xd0] sm:$0xff]
  %v54 = vld [vmem:[%s3 + $0xd8] sm:$0xff]
  %v55 = vld [vmem:[%s3 + $0xe0] sm:$0xff]
  %v56 = vld [vmem:[%s3 + $0xe8] sm:$0xff]
  %v57 = vld [vmem:[%s3 + $0xf0] sm:$0xff]
  %v58 = vld [vmem:[%s3 + $0xf8] sm:$0xff]
  %v59 = vld [vmem:[%s2] sm:$0xf]
  %v60 = vld [vmem:[%s2 + $0x4] sm:$0xf]
  %v61 = vld [vmem:[%s2 + $0x8] sm:$0xf]
  %v62 = vld [vmem:[%s2 + $0xc] sm:$0xf]
  %v63 = vld [vmem:[%s2 + $0x10] sm:$0xf]
  %v64 = vld [vmem:[%s2 + $0x14] sm:$0xf]
  %v65 = vld [vmem:[%s2 + $0x18] sm:$0xf]
  %v66 = vld [vmem:[%s2 + $0x1c] sm:$0xf]
  %v67 = vld [vmem:[%s2 + $0x20] sm:$0xf]
  %v68 = vld [vmem:[%s2 + $0x24] sm:$0xf]
  %v69 = vld [vmem:[%s2 + $0x28] sm:$0xf]
  %v70 = vld [vmem:[%s2 + $0x2c] sm:$0xf]
  %v71 = vld [vmem:[%s2 + $0x30] sm:$0xf]
  %v72 = vld [vmem:[%s2 + $0x34] sm:$0xf]
  %v73 = vld [vmem:[%s2 + $0x38] sm:$0xf]
  %v74 = vld [vmem:[%s2 + $0x3c] sm:$0xf]
  %v75 = vld [vmem:[%s2 + $0x40] sm:$0xf]
  %v76 = vld [vmem:[%s2 + $0x44] sm:$0xf]
  %v77 = vld [vmem:[%s2 + $0x48] sm:$0xf]
  %v78 = vld [vmem:[%s2 + $0x4c] sm:$0xf]
  %v79 = vld [vmem:[%s2 + $0x50] sm:$0xf]
  %v80 = vld [vmem:[%s2 + $0x54] sm:$0xf]
  %v81 = vld [vmem:[%s2 + $0x58] sm:$0xf]
  %v82 = vld [vmem:[%s2 + $0x5c] sm:$0xf]
  %v83 = vld [vmem:[%s2 + $0x60] sm:$0xf]
  %v84 = vld [vmem:[%s2 + $0x64] sm:$0xf]
  %v85 = vld [vmem:[%s2 + $0x68] sm:$0xf]
  %v86 = vld [vmem:[%s2 + $0x6c] sm:$0xf]
  %v87 = vld [vmem:[%s2 + $0x70] sm:$0xf]
  %v88 = vld [vmem:[%s2 + $0x74] sm:$0xf]
  %v89 = vld [vmem:[%s2 + $0x78] sm:$0xf]
  %v90 = vld [vmem:[%s2 + $0x7c] sm:$0xf]
  %v123 = vunpack.c.l.b16 %v27
  %v124 = vunpack.c.h.b16 %v27
  %v125 = vunpack.c.l.b16 %v28
  %v126 = vunpack.c.h.b16 %v28
  %v127 = vunpack.c.l.b16 %v29
  %v128 = vunpack.c.h.b16 %v29
  %v129 = vunpack.c.l.b16 %v30
  %v130 = vunpack.c.h.b16 %v30
  %v131 = vunpack.c.l.b16 %v31
  %v132 = vunpack.c.h.b16 %v31
  %v133 = vunpack.c.l.b16 %v32
  %v134 = vunpack.c.h.b16 %v32
  %v135 = vunpack.c.l.b16 %v33
  %v136 = vunpack.c.h.b16 %v33
  %v137 = vunpack.c.l.b16 %v34
  %v138 = vunpack.c.h.b16 %v34
  %v139 = vunpack.c.l.b16 %v35
  %v140 = vunpack.c.h.b16 %v35
  %v141 = vunpack.c.l.b16 %v36
  %v142 = vunpack.c.h.b16 %v36
  %v143 = vunpack.c.l.b16 %v37
  %v144 = vunpack.c.h.b16 %v37
  %v145 = vunpack.c.l.b16 %v38
  %v146 = vunpack.c.h.b16 %v38
  %v147 = vunpack.c.l.b16 %v39
  %v148 = vunpack.c.h.b16 %v39
  %v149 = vunpack.c.l.b16 %v40
  %v150 = vunpack.c.h.b16 %v40
  %v151 = vunpack.c.l.b16 %v41
  %v152 = vunpack.c.h.b16 %v41
  %v153 = vunpack.c.l.b16 %v42
  %v154 = vunpack.c.h.b16 %v42
  %v155 = vunpack.c.l.b16 %v43
  %v156 = vunpack.c.h.b16 %v43
  %v157 = vunpack.c.l.b16 %v44
  %v158 = vunpack.c.h.b16 %v44
  %v159 = vunpack.c.l.b16 %v45
  %v160 = vunpack.c.h.b16 %v45
  %v161 = vunpack.c.l.b16 %v46
  %v162 = vunpack.c.h.b16 %v46
  %v163 = vunpack.c.l.b16 %v47
  %v164 = vunpack.c.h.b16 %v47
  %v165 = vunpack.c.l.b16 %v48
  %v166 = vunpack.c.h.b16 %v48
  %v167 = vunpack.c.l.b16 %v49
  %v168 = vunpack.c.h.b16 %v49
  %v169 = vunpack.c.l.b16 %v50
  %v170 = vunpack.c.h.b16 %v50
  %v171 = vunpack.c.l.b16 %v51
  %v172 = vunpack.c.h.b16 %v51
  %v173 = vunpack.c.l.b16 %v52
  %v174 = vunpack.c.h.b16 %v52
  %v175 = vunpack.c.l.b16 %v53
  %v176 = vunpack.c.h.b16 %v53
  %v177 = vunpack.c.l.b16 %v54
  %v178 = vunpack.c.h.b16 %v54
  %v179 = vunpack.c.l.b16 %v55
  %v180 = vunpack.c.h.b16 %v55
  %v181 = vunpack.c.l.b16 %v56
  %v182 = vunpack.c.h.b16 %v56
  %v183 = vunpack.c.l.b16 %v57
  %v184 = vunpack.c.h.b16 %v57
  %v185 = vunpack.c.l.b16 %v58
  %v186 = vunpack.c.h.b16 %v58
  %v187 = vpack.c.b16 %v125, %v123
  %v188 = vpack.c.b16 %v126, %v124
  %v189 = vpack.c.b16 %v129, %v127
  %v190 = vpack.c.b16 %v130, %v128
  %v191 = vpack.c.b16 %v133, %v131
  %v192 = vpack.c.b16 %v134, %v132
  %v193 = vpack.c.b16 %v137, %v135
  %v194 = vpack.c.b16 %v138, %v136
  %v195 = vpack.c.b16 %v141, %v139
  %v196 = vpack.c.b16 %v142, %v140
  %v197 = vpack.c.b16 %v145, %v143
  %v198 = vpack.c.b16 %v146, %v144
  %v199 = vpack.c.b16 %v149, %v147
  %v200 = vpack.c.b16 %v150, %v148
  %v201 = vpack.c.b16 %v153, %v151
  %v202 = vpack.c.b16 %v154, %v152
  %v203 = vpack.c.b16 %v157, %v155
  %v204 = vpack.c.b16 %v158, %v156
  %v205 = vpack.c.b16 %v161, %v159
  %v206 = vpack.c.b16 %v162, %v160
  %v207 = vpack.c.b16 %v165, %v163
  %v208 = vpack.c.b16 %v166, %v164
  %v209 = vpack.c.b16 %v169, %v167
  %v210 = vpack.c.b16 %v170, %v168
  %v211 = vpack.c.b16 %v173, %v171
  %v212 = vpack.c.b16 %v174, %v172
  %v213 = vpack.c.b16 %v177, %v175
  %v214 = vpack.c.b16 %v178, %v176
  %v215 = vpack.c.b16 %v181, %v179
  %v216 = vpack.c.b16 %v182, %v180
  %v217 = vpack.c.b16 %v185, %v183
  %v218 = vpack.c.b16 %v186, %v184
  %v283 = vunpack.c.l.b16 %v59
  %v284 = vunpack.c.l.b16 %v60
  %v285 = vunpack.c.l.b16 %v61
  %v286 = vunpack.c.l.b16 %v62
  %v287 = vunpack.c.l.b16 %v63
  %v288 = vunpack.c.l.b16 %v64
  %v289 = vunpack.c.l.b16 %v65
  %v290 = vunpack.c.l.b16 %v66
  %v291 = vunpack.c.l.b16 %v67
  %v292 = vunpack.c.l.b16 %v68
  %v293 = vunpack.c.l.b16 %v69
  %v294 = vunpack.c.l.b16 %v70
  %v295 = vunpack.c.l.b16 %v71
  %v296 = vunpack.c.l.b16 %v72
  %v297 = vunpack.c.l.b16 %v73
  %v298 = vunpack.c.l.b16 %v74
  %v299 = vunpack.c.l.b16 %v75
  %v300 = vunpack.c.l.b16 %v76
  %v301 = vunpack.c.l.b16 %v77
  %v302 = vunpack.c.l.b16 %v78
  %v303 = vunpack.c.l.b16 %v79
  %v304 = vunpack.c.l.b16 %v80
  %v305 = vunpack.c.l.b16 %v81
  %v306 = vunpack.c.l.b16 %v82
  %v307 = vunpack.c.l.b16 %v83
  %v308 = vunpack.c.l.b16 %v84
  %v309 = vunpack.c.l.b16 %v85
  %v310 = vunpack.c.l.b16 %v86
  %v311 = vunpack.c.l.b16 %v87
  %v312 = vunpack.c.l.b16 %v88
  %v313 = vunpack.c.l.b16 %v89
  %v314 = vunpack.c.l.b16 %v90
  %v315 = vpack.c.b16 %v284, %v283
  %v316 = vpack.c.b16 %v286, %v285
  %v317 = vpack.c.b16 %v288, %v287
  %v318 = vpack.c.b16 %v290, %v289
  %v319 = vpack.c.b16 %v292, %v291
  %v320 = vpack.c.b16 %v294, %v293
  %v321 = vpack.c.b16 %v296, %v295
  %v322 = vpack.c.b16 %v298, %v297
  %v323 = vpack.c.b16 %v300, %v299
  %v324 = vpack.c.b16 %v302, %v301
  %v325 = vpack.c.b16 %v304, %v303
  %v326 = vpack.c.b16 %v306, %v305
  %v327 = vpack.c.b16 %v308, %v307
  %v328 = vpack.c.b16 %v310, %v309
  %v329 = vpack.c.b16 %v312, %v311
  %v330 = vpack.c.b16 %v314, %v313
  %347 = vmatprep.subr.bf16.mxu0 0
  %348 = vmatpush1.bf16.msra.mxu0 %v322
  %349 = vmatprep.subr.bf16.mxu0 0
  %350 = vmatpush1.bf16.msra.mxu0 %v321
  %351 = vmatprep.subr.bf16.mxu0 0
  %352 = vmatpush1.bf16.msra.mxu0 %v320
  %353 = vmatprep.subr.bf16.mxu0 0
  %354 = vmatpush1.bf16.msra.mxu0 %v319
  %355 = vmatprep.subr.bf16.mxu0 0
  %356 = vmatpush1.bf16.msra.mxu0 %v318
  %357 = vmatprep.subr.bf16.mxu0 0
  %358 = vmatpush1.bf16.msra.mxu0 %v317
  %359 = vmatprep.subr.bf16.mxu0 0
  %360 = vmatpush1.bf16.msra.mxu0 %v316
  %361 = vmatprep.subr.bf16.mxu0 0
  %362 = vmatpush1.bf16.msra.mxu0 %v315
  %363 = vmatprep.subr.bf16.mxu0 0
  %364 = vmatpush2.bf16.msra.mxu0 %v330
  %365 = vmatprep.subr.bf16.mxu0 0
  %366 = vmatpush2.bf16.msra.mxu0 %v329
  %367 = vmatprep.subr.bf16.mxu0 0
  %368 = vmatpush2.bf16.msra.mxu0 %v328
  %369 = vmatprep.subr.bf16.mxu0 0
  %370 = vmatpush2.bf16.msra.mxu0 %v327
  %371 = vmatprep.subr.bf16.mxu0 0
  %372 = vmatpush2.bf16.msra.mxu0 %v326
  %373 = vmatprep.subr.bf16.mxu0 0
  %374 = vmatpush2.bf16.msra.mxu0 %v325
  %375 = vmatprep.subr.bf16.mxu0 0
  %376 = vmatpush2.bf16.msra.mxu0 %v324
  %377 = vmatprep.subr.bf16.mxu0 0
  %378 = vmatpush2.bf16.msra.mxu0 %v323
  %379 = vmatprep.mubr.bf16.mxu0 %v188
  %380 = vmatmul.mubr.bf16.gmra.mxu0 %v187
  %v381 = vpop.f32.mrf.mxu0
  %v382 = vadd.f32 0.0, %v381
  %v383 = vpop.f32.mrf.mxu0
  %v384 = vpop.f32.mrf.mxu0
  %v385 = vadd.f32 0.0, %v384
  %v386 = vpop.f32.mrf.mxu0
  %387 = vmatprep.mubr.bf16.mxu0 %v190
  %388 = vmatmul.mubr.bf16.gmra.mxu0 %v189
  %v389 = vpop.f32.mrf.mxu0
  %v390 = vadd.f32 0.0, %v389
  %v391 = vpop.f32.mrf.mxu0
  %v392 = vpop.f32.mrf.mxu0
  %v393 = vadd.f32 0.0, %v392
  %v394 = vpop.f32.mrf.mxu0
  %395 = vmatprep.mubr.bf16.mxu0 %v192
  %396 = vmatmul.mubr.bf16.gmra.mxu0 %v191
  %v397 = vpop.f32.mrf.mxu0
  %v398 = vadd.f32 0.0, %v397
  %v399 = vpop.f32.mrf.mxu0
  %v400 = vpop.f32.mrf.mxu0
  %v401 = vadd.f32 0.0, %v400
  %v402 = vpop.f32.mrf.mxu0
  %403 = vmatprep.mubr.bf16.mxu0 %v194
  %404 = vmatmul.mubr.bf16.gmra.mxu0 %v193
  %v405 = vpop.f32.mrf.mxu0
  %v406 = vadd.f32 0.0, %v405
  %v407 = vpop.f32.mrf.mxu0
  %v408 = vpop.f32.mrf.mxu0
  %v409 = vadd.f32 0.0, %v408
  %v410 = vpop.f32.mrf.mxu0
  %411 = vmatprep.mubr.bf16.mxu0 %v196
  %412 = vmatmul.mubr.bf16.gmra.mxu0 %v195
  %v413 = vpop.f32.mrf.mxu0
  %v414 = vadd.f32 0.0, %v413
  %v415 = vpop.f32.mrf.mxu0
  %v416 = vpop.f32.mrf.mxu0
  %v417 = vadd.f32 0.0, %v416
  %v418 = vpop.f32.mrf.mxu0
  %419 = vmatprep.mubr.bf16.mxu0 %v198
  %420 = vmatmul.mubr.bf16.gmra.mxu0 %v197
  %v421 = vpop.f32.mrf.mxu0
  %v422 = vadd.f32 0.0, %v421
  %v423 = vpop.f32.mrf.mxu0
  %v424 = vpop.f32.mrf.mxu0
  %v425 = vadd.f32 0.0, %v424
  %v426 = vpop.f32.mrf.mxu0
  %427 = vmatprep.mubr.bf16.mxu0 %v200
  %428 = vmatmul.mubr.bf16.gmra.mxu0 %v199
  %v429 = vpop.f32.mrf.mxu0
  %v430 = vadd.f32 0.0, %v429
  %v431 = vpop.f32.mrf.mxu0
  %v432 = vpop.f32.mrf.mxu0
  %v433 = vadd.f32 0.0, %v432
  %v434 = vpop.f32.mrf.mxu0
  %435 = vmatprep.mubr.bf16.mxu0 %v202
  %436 = vmatmul.mubr.bf16.gmra.mxu0 %v201
  %v437 = vpop.f32.mrf.mxu0
  %v438 = vadd.f32 0.0, %v437
  %v439 = vpop.f32.mrf.mxu0
  %v440 = vpop.f32.mrf.mxu0
  %v441 = vadd.f32 0.0, %v440
  %v442 = vpop.f32.mrf.mxu0
  %443 = vmatprep.mubr.bf16.mxu0 %v204
  %444 = vmatmul.mubr.bf16.gmra.mxu0 %v203
  %v445 = vpop.f32.mrf.mxu0
  %v446 = vadd.f32 0.0, %v445
  %v447 = vpop.f32.mrf.mxu0
  %v448 = vpop.f32.mrf.mxu0
  %v449 = vadd.f32 0.0, %v448
  %v450 = vpop.f32.mrf.mxu0
  %451 = vmatprep.mubr.bf16.mxu0 %v206
  %452 = vmatmul.mubr.bf16.gmra.mxu0 %v205
  %v453 = vpop.f32.mrf.mxu0
  %v454 = vadd.f32 0.0, %v453
  %v455 = vpop.f32.mrf.mxu0
  %v456 = vpop.f32.mrf.mxu0
  %v457 = vadd.f32 0.0, %v456
  %v458 = vpop.f32.mrf.mxu0
  %459 = vmatprep.mubr.bf16.mxu0 %v208
  %460 = vmatmul.mubr.bf16.gmra.mxu0 %v207
  %v461 = vpop.f32.mrf.mxu0
  %v462 = vadd.f32 0.0, %v461
  %v463 = vpop.f32.mrf.mxu0
  %v464 = vpop.f32.mrf.mxu0
  %v465 = vadd.f32 0.0, %v464
  %v466 = vpop.f32.mrf.mxu0
  %467 = vmatprep.mubr.bf16.mxu0 %v210
  %468 = vmatmul.mubr.bf16.gmra.mxu0 %v209
  %v469 = vpop.f32.mrf.mxu0
  %v470 = vadd.f32 0.0, %v469
  %v471 = vpop.f32.mrf.mxu0
  %v472 = vpop.f32.mrf.mxu0
  %v473 = vadd.f32 0.0, %v472
  %v474 = vpop.f32.mrf.mxu0
  %475 = vmatprep.mubr.bf16.mxu0 %v212
  %476 = vmatmul.mubr.bf16.gmra.mxu0 %v211
  %v477 = vpop.f32.mrf.mxu0
  %v478 = vadd.f32 0.0, %v477
  %v479 = vpop.f32.mrf.mxu0
  %v480 = vpop.f32.mrf.mxu0
  %v481 = vadd.f32 0.0, %v480
  %v482 = vpop.f32.mrf.mxu0
  %483 = vmatprep.mubr.bf16.mxu0 %v214
  %484 = vmatmul.mubr.bf16.gmra.mxu0 %v213
  %v485 = vpop.f32.mrf.mxu0
  %v486 = vadd.f32 0.0, %v485
  %v487 = vpop.f32.mrf.mxu0
  %v488 = vpop.f32.mrf.mxu0
  %v489 = vadd.f32 0.0, %v488
  %v490 = vpop.f32.mrf.mxu0
  %491 = vmatprep.mubr.bf16.mxu0 %v216
  %492 = vmatmul.mubr.bf16.gmra.mxu0 %v215
  %v493 = vpop.f32.mrf.mxu0
  %v494 = vadd.f32 0.0, %v493
  %v495 = vpop.f32.mrf.mxu0
  %v496 = vpop.f32.mrf.mxu0
  %v497 = vadd.f32 0.0, %v496
  %v498 = vpop.f32.mrf.mxu0
  %499 = vmatprep.mubr.bf16.mxu0 %v218
  %500 = vmatmul.mubr.bf16.gmra.mxu0 %v217
  %v501 = vpop.f32.mrf.mxu0
  %v502 = vadd.f32 0.0, %v501
  %v503 = vpop.f32.mrf.mxu0
  %v504 = vpop.f32.mrf.mxu0
  %v505 = vadd.f32 0.0, %v504
  %v506 = vpop.f32.mrf.mxu0
  %507 = vdwg.mxu0
  %s508 = smul.u32 0, 256
  %s509 = scalar_lea.vmem [#allocation2], %s508
  %vm510 = vcmask 261120
  %511 = vst.msk [vmem:[%s509] sm:$0xff] %vm510, %v382
  %512 = vst.msk [vmem:[%s509 + $0x8] sm:$0xff] %vm510, %v385
  %513 = vst.msk [vmem:[%s509 + $0x10] sm:$0xff] %vm510, %v390
  %514 = vst.msk [vmem:[%s509 + $0x18] sm:$0xff] %vm510, %v393
  %515 = vst.msk [vmem:[%s509 + $0x20] sm:$0xff] %vm510, %v398
  %516 = vst.msk [vmem:[%s509 + $0x28] sm:$0xff] %vm510, %v401
  %517 = vst.msk [vmem:[%s509 + $0x30] sm:$0xff] %vm510, %v406
  %518 = vst.msk [vmem:[%s509 + $0x38] sm:$0xff] %vm510, %v409
  %519 = vst.msk [vmem:[%s509 + $0x40] sm:$0xff] %vm510, %v414
  %520 = vst.msk [vmem:[%s509 + $0x48] sm:$0xff] %vm510, %v417
  %521 = vst.msk [vmem:[%s509 + $0x50] sm:$0xff] %vm510, %v422
  %522 = vst.msk [vmem:[%s509 + $0x58] sm:$0xff] %vm510, %v425
  %523 = vst.msk [vmem:[%s509 + $0x60] sm:$0xff] %vm510, %v430
  %524 = vst.msk [vmem:[%s509 + $0x68] sm:$0xff] %vm510, %v433
  %525 = vst.msk [vmem:[%s509 + $0x70] sm:$0xff] %vm510, %v438
  %526 = vst.msk [vmem:[%s509 + $0x78] sm:$0xff] %vm510, %v441
  %527 = vst.msk [vmem:[%s509 + $0x80] sm:$0xff] %vm510, %v446
  %528 = vst.msk [vmem:[%s509 + $0x88] sm:$0xff] %vm510, %v449
  %529 = vst.msk [vmem:[%s509 + $0x90] sm:$0xff] %vm510, %v454
  %530 = vst.msk [vmem:[%s509 + $0x98] sm:$0xff] %vm510, %v457
  %531 = vst.msk [vmem:[%s509 + $0xa0] sm:$0xff] %vm510, %v462
  %532 = vst.msk [vmem:[%s509 + $0xa8] sm:$0xff] %vm510, %v465
  %533 = vst.msk [vmem:[%s509 + $0xb0] sm:$0xff] %vm510, %v470
  %534 = vst.msk [vmem:[%s509 + $0xb8] sm:$0xff] %vm510, %v473
  %535 = vst.msk [vmem:[%s509 + $0xc0] sm:$0xff] %vm510, %v478
  %536 = vst.msk [vmem:[%s509 + $0xc8] sm:$0xff] %vm510, %v481
  %537 = vst.msk [vmem:[%s509 + $0xd0] sm:$0xff] %vm510, %v486
  %538 = vst.msk [vmem:[%s509 + $0xd8] sm:$0xff] %vm510, %v489
  %539 = vst.msk [vmem:[%s509 + $0xe0] sm:$0xff] %vm510, %v494
  %540 = vst.msk [vmem:[%s509 + $0xe8] sm:$0xff] %vm510, %v497
  %541 = vst.msk [vmem:[%s509 + $0xf0] sm:$0xff] %vm510, %v502
  %542 = vst.msk [vmem:[%s509 + $0xf8] sm:$0xff] %vm510, %v505
  %p543 = scmp.eq.s32.totalorder 0, 0
  // Predicated region
  $region14: #{layer_forward.1} parent=0 // pred_check
    %p544 = pneg %p543
  $region15: #{layer_forward.1} parent=0 // pred_check_branch
    %546 = sbr.rel (%p544) target = $region17
  $region16: #{layer_forward.1} parent=0 // pred_region
    %v547 = vld [vmem:[%s4] sm:$0x1]
    %v548 = vld [vmem:[%s4 + $0x1] sm:$0x1]
    %v549 = vld [vmem:[%s4 + $0x2] sm:$0x1]
    loop: start=0, step=1, limit=128
    $region18: #{layer_forward.1} parent=16 // loop_pre_header
      _
    $region19: #{layer_forward.1} parent=16 // loop_header
      %s551 = sphi 0, %s555
      %p552 = scmp.ge.s32.totalorder %s551, 128
    $region20: #{layer_forward.1} parent=16 // loop_header_branch
      %554 = sbr.rel (%p552) target = $region24
    $region21: #{layer_forward.1} parent=16 // loop_body
      %s556 = sadd.s32 0, %s551
      %s557 = sld [smem:[#allocation6 + %s556]]
      %s558 = sld [smem:[#allocation7 + %s556]]
      %s559 = scalar_lea.vmem [#allocation2], %s557
      %v560 = vld [vmem:[%s559] sm:$0x1]
      %s561 = scalar_lea.vmem [#allocation3], %s551
      %vm562 = vcmask 253952
      %563 = vst.msk [vmem:[%s561] sm:$0x1] %vm562, %v560
      %s564 = scalar_lea.vmem [#allocation2], %s558
      %v565 = vld [vmem:[%s564] sm:$0x1]
      %s566 = scalar_lea.vmem [#allocation4], %s551
      %567 = vst.msk [vmem:[%s566] sm:$0x1] %vm562, %v565
    $region22: #{layer_forward.1} parent=16 // loop_footer
      %s555 = sadd.s32 1, %s551
    $region23: #{layer_forward.1} parent=16 // loop_footer_branch
      %550 = sbr.rel target = $region19
    $region24: #{layer_forward.1} parent=16 // loop_exit
      _
    %v568 = vld [vmem:[#allocation3] sm:$0xff]
    %v569 = vld [vmem:[#allocation3 + $0x8] sm:$0xff]
    %v570 = vld [vmem:[#allocation3 + $0x10] sm:$0xff]
    %v571 = vld [vmem:[#allocation3 + $0x18] sm:$0xff]
    %v572 = vld [vmem:[#allocation3 + $0x20] sm:$0xff]
    %v573 = vld [vmem:[#allocation3 + $0x28] sm:$0xff]
    %v574 = vld [vmem:[#allocation3 + $0x30] sm:$0xff]
    %v575 = vld [vmem:[#allocation3 + $0x38] sm:$0xff]
    %v576 = vld [vmem:[#allocation3 + $0x40] sm:$0xff]
    %v577 = vld [vmem:[#allocation3 + $0x48] sm:$0xff]
    %v578 = vld [vmem:[#allocation3 + $0x50] sm:$0xff]
    %v579 = vld [vmem:[#allocation3 + $0x58] sm:$0xff]
    %v580 = vld [vmem:[#allocation3 + $0x60] sm:$0xff]
    %v581 = vld [vmem:[#allocation3 + $0x68] sm:$0xff]
    %v582 = vld [vmem:[#allocation3 + $0x70] sm:$0xff]
    %v583 = vld [vmem:[#allocation3 + $0x78] sm:$0xff]
    %v584 = vld [vmem:[#allocation4] sm:$0xff]
    %v585 = vld [vmem:[#allocation4 + $0x8] sm:$0xff]
    %v586 = vld [vmem:[#allocation4 + $0x10] sm:$0xff]
    %v587 = vld [vmem:[#allocation4 + $0x18] sm:$0xff]
    %v588 = vld [vmem:[#allocation4 + $0x20] sm:$0xff]
    %v589 = vld [vmem:[#allocation4 + $0x28] sm:$0xff]
    %v590 = vld [vmem:[#allocation4 + $0x30] sm:$0xff]
    %v591 = vld [vmem:[#allocation4 + $0x38] sm:$0xff]
    %v592 = vld [vmem:[#allocation4 + $0x40] sm:$0xff]
    %v593 = vld [vmem:[#allocation4 + $0x48] sm:$0xff]
    %v594 = vld [vmem:[#allocation4 + $0x50] sm:$0xff]
    %v595 = vld [vmem:[#allocation4 + $0x58] sm:$0xff]
    %v596 = vld [vmem:[#allocation4 + $0x60] sm:$0xff]
    %v597 = vld [vmem:[#allocation4 + $0x68] sm:$0xff]
    %v598 = vld [vmem:[#allocation4 + $0x70] sm:$0xff]
    %v599 = vld [vmem:[#allocation4 + $0x78] sm:$0xff]
    %v600 = vmax.f32 %v568, 0.0
    %v601 = vmax.f32 %v569, 0.0
    %v602 = vmax.f32 %v570, 0.0
    %v603 = vmax.f32 %v571, 0.0
    %v604 = vmax.f32 %v572, 0.0
    %v605 = vmax.f32 %v573, 0.0
    %v606 = vmax.f32 %v574, 0.0
    %v607 = vmax.f32 %v575, 0.0
    %v608 = vmax.f32 %v576, 0.0
    %v609 = vmax.f32 %v577, 0.0
    %v610 = vmax.f32 %v578, 0.0
    %v611 = vmax.f32 %v579, 0.0
    %v612 = vmax.f32 %v580, 0.0
    %v613 = vmax.f32 %v581, 0.0
    %v614 = vmax.f32 %v582, 0.0
    %v615 = vmax.f32 %v583, 0.0
    %v616 = vlaneseq
    %v617 = vshrl.u32 %v616, 7
    %v618 = vsub.s32 0, %v617
    %v619 = vrot.slane %v547, %v618
    %v620 = vmul.f32 %v600, %v619
    %v621 = vmul.f32 %v601, %v619
    %v622 = vmul.f32 %v602, %v619
    %v623 = vmul.f32 %v603, %v619
    %v624 = vmul.f32 %v604, %v619
    %v625 = vmul.f32 %v605, %v619
    %v626 = vmul.f32 %v606, %v619
    %v627 = vmul.f32 %v607, %v619
    %v628 = vmul.f32 %v608, %v619
    %v629 = vmul.f32 %v609, %v619
    %v630 = vmul.f32 %v610, %v619
    %v631 = vmul.f32 %v611, %v619
    %v632 = vmul.f32 %v612, %v619
    %v633 = vmul.f32 %v613, %v619
    %v634 = vmul.f32 %v614, %v619
    %v635 = vmul.f32 %v615, %v619
    %v636 = vmax.f32 %v584, 0.0
    %v637 = vmax.f32 %v585, 0.0
    %v638 = vmax.f32 %v586, 0.0
    %v639 = vmax.f32 %v587, 0.0
    %v640 = vmax.f32 %v588, 0.0
    %v641 = vmax.f32 %v589, 0.0
    %v642 = vmax.f32 %v590, 0.0
    %v643 = vmax.f32 %v591, 0.0
    %v644 = vmax.f32 %v592, 0.0
    %v645 = vmax.f32 %v593, 0.0
    %v646 = vmax.f32 %v594, 0.0
    %v647 = vmax.f32 %v595, 0.0
    %v648 = vmax.f32 %v596, 0.0
    %v649 = vmax.f32 %v597, 0.0
    %v650 = vmax.f32 %v598, 0.0
    %v651 = vmax.f32 %v599, 0.0
    %v652 = vlaneseq
    %v653 = vshrl.u32 %v652, 7
    %v654 = vsub.s32 0, %v653
    %v655 = vrot.slane %v548, %v654
    %v656 = vmul.f32 %v636, %v655
    %v657 = vmul.f32 %v637, %v655
    %v658 = vmul.f32 %v638, %v655
    %v659 = vmul.f32 %v639, %v655
    %v660 = vmul.f32 %v640, %v655
    %v661 = vmul.f32 %v641, %v655
    %v662 = vmul.f32 %v642, %v655
    %v663 = vmul.f32 %v643, %v655
    %v664 = vmul.f32 %v644, %v655
    %v665 = vmul.f32 %v645, %v655
    %v666 = vmul.f32 %v646, %v655
    %v667 = vmul.f32 %v647, %v655
    %v668 = vmul.f32 %v648, %v655
    %v669 = vmul.f32 %v649, %v655
    %v670 = vmul.f32 %v650, %v655
    %v671 = vmul.f32 %v651, %v655
    %v672 = vadd.f32 %v620, %v656
    %v673 = vadd.f32 %v621, %v657
    %v674 = vadd.f32 %v622, %v658
    %v675 = vadd.f32 %v623, %v659
    %v676 = vadd.f32 %v624, %v660
    %v677 = vadd.f32 %v625, %v661
    %v678 = vadd.f32 %v626, %v662
    %v679 = vadd.f32 %v627, %v663
    %v680 = vadd.f32 %v628, %v664
    %v681 = vadd.f32 %v629, %v665
    %v682 = vadd.f32 %v630, %v666
    %v683 = vadd.f32 %v631, %v667
    %v684 = vadd.f32 %v632, %v668
    %v685 = vadd.f32 %v633, %v669
    %v686 = vadd.f32 %v634, %v670
    %v687 = vadd.f32 %v635, %v671
    %v688 = vmul.f32 %v568, %v584
    %v689 = vmul.f32 %v569, %v585
    %v690 = vmul.f32 %v570, %v586
    %v691 = vmul.f32 %v571, %v587
    %v692 = vmul.f32 %v572, %v588
    %v693 = vmul.f32 %v573, %v589
    %v694 = vmul.f32 %v574, %v590
    %v695 = vmul.f32 %v575, %v591
    %v696 = vmul.f32 %v576, %v592
    %v697 = vmul.f32 %v577, %v593
    %v698 = vmul.f32 %v578, %v594
    %v699 = vmul.f32 %v579, %v595
    %v700 = vmul.f32 %v580, %v596
    %v701 = vmul.f32 %v581, %v597
    %v702 = vmul.f32 %v582, %v598
    %v703 = vmul.f32 %v583, %v599
    %v704 = vlaneseq
    %v705 = vshrl.u32 %v704, 7
    %v706 = vsub.s32 0, %v705
    %v707 = vrot.slane %v549, %v706
    %v708 = vmul.f32 %v688, %v707
    %v709 = vmul.f32 %v689, %v707
    %v710 = vmul.f32 %v690, %v707
    %v711 = vmul.f32 %v691, %v707
    %v712 = vmul.f32 %v692, %v707
    %v713 = vmul.f32 %v693, %v707
    %v714 = vmul.f32 %v694, %v707
    %v715 = vmul.f32 %v695, %v707
    %v716 = vmul.f32 %v696, %v707
    %v717 = vmul.f32 %v697, %v707
    %v718 = vmul.f32 %v698, %v707
    %v719 = vmul.f32 %v699, %v707
    %v720 = vmul.f32 %v700, %v707
    %v721 = vmul.f32 %v701, %v707
    %v722 = vmul.f32 %v702, %v707
    %v723 = vmul.f32 %v703, %v707
    %v724 = vadd.f32 %v672, %v708
    %v725 = vadd.f32 %v673, %v709
    %v726 = vadd.f32 %v674, %v710
    %v727 = vadd.f32 %v675, %v711
    %v728 = vadd.f32 %v676, %v712
    %v729 = vadd.f32 %v677, %v713
    %v730 = vadd.f32 %v678, %v714
    %v731 = vadd.f32 %v679, %v715
    %v732 = vadd.f32 %v680, %v716
    %v733 = vadd.f32 %v681, %v717
    %v734 = vadd.f32 %v682, %v718
    %v735 = vadd.f32 %v683, %v719
    %v736 = vadd.f32 %v684, %v720
    %v737 = vadd.f32 %v685, %v721
    %v738 = vadd.f32 %v686, %v722
    %v739 = vadd.f32 %v687, %v723
    %v740 = vsel %vm510, %v724, 0.0
    %741 = vadd.xlane.f32.xlu0 %v740
    %v742 = vpop.xlane.xlu0 %741
    %v743 = vsel %vm510, %v725, 0.0
    %744 = vadd.xlane.f32.xlu0 %v743
    %v745 = vpop.xlane.xlu0 %744
    %v746 = vsel %vm510, %v726, 0.0
    %747 = vadd.xlane.f32.xlu0 %v746
    %v748 = vpop.xlane.xlu0 %747
    %v749 = vsel %vm510, %v727, 0.0
    %750 = vadd.xlane.f32.xlu0 %v749
    %v751 = vpop.xlane.xlu0 %750
    %v752 = vsel %vm510, %v728, 0.0
    %753 = vadd.xlane.f32.xlu0 %v752
    %v754 = vpop.xlane.xlu0 %753
    %v755 = vsel %vm510, %v729, 0.0
    %756 = vadd.xlane.f32.xlu0 %v755
    %v757 = vpop.xlane.xlu0 %756
    %v758 = vsel %vm510, %v730, 0.0
    %759 = vadd.xlane.f32.xlu0 %v758
    %v760 = vpop.xlane.xlu0 %759
    %v761 = vsel %vm510, %v731, 0.0
    %762 = vadd.xlane.f32.xlu0 %v761
    %v763 = vpop.xlane.xlu0 %762
    %v764 = vsel %vm510, %v732, 0.0
    %765 = vadd.xlane.f32.xlu0 %v764
    %v766 = vpop.xlane.xlu0 %765
    %v767 = vsel %vm510, %v733, 0.0
    %768 = vadd.xlane.f32.xlu0 %v767
    %v769 = vpop.xlane.xlu0 %768
    %v770 = vsel %vm510, %v734, 0.0
    %771 = vadd.xlane.f32.xlu0 %v770
    %v772 = vpop.xlane.xlu0 %771
    %v773 = vsel %vm510, %v735, 0.0
    %774 = vadd.xlane.f32.xlu0 %v773
    %v775 = vpop.xlane.xlu0 %774
    %v776 = vsel %vm510, %v736, 0.0
    %777 = vadd.xlane.f32.xlu0 %v776
    %v778 = vpop.xlane.xlu0 %777
    %v779 = vsel %vm510, %v737, 0.0
    %780 = vadd.xlane.f32.xlu0 %v779
    %v781 = vpop.xlane.xlu0 %780
    %v782 = vsel %vm510, %v738, 0.0
    %783 = vadd.xlane.f32.xlu0 %v782
    %v784 = vpop.xlane.xlu0 %783
    %v785 = vsel %vm510, %v739, 0.0
    %786 = vadd.xlane.f32.xlu0 %v785
    %v787 = vpop.xlane.xlu0 %786
    %v788 = vxor.u32 %v742, 2147483648
    %v789 = vxor.u32 %v745, 2147483648
    %v790 = vxor.u32 %v748, 2147483648
    %v791 = vxor.u32 %v751, 2147483648
    %v792 = vxor.u32 %v754, 2147483648
    %v793 = vxor.u32 %v757, 2147483648
    %v794 = vxor.u32 %v760, 2147483648
    %v795 = vxor.u32 %v763, 2147483648
    %v796 = vxor.u32 %v766, 2147483648
    %v797 = vxor.u32 %v769, 2147483648
    %v798 = vxor.u32 %v772, 2147483648
    %v799 = vxor.u32 %v775, 2147483648
    %v800 = vxor.u32 %v778, 2147483648
    %v801 = vxor.u32 %v781, 2147483648
    %v802 = vxor.u32 %v784, 2147483648
    %v803 = vxor.u32 %v787, 2147483648
    %v804 = vmul.f32 %v788, 1.442695
    %v805 = vpow.pop %v804
    %v806 = vmul.f32 %v789, 1.442695
    %v807 = vpow.pop %v806
    %v808 = vmul.f32 %v790, 1.442695
    %v809 = vpow.pop %v808
    %v810 = vmul.f32 %v791, 1.442695
    %v811 = vpow.pop %v810
    %v812 = vmul.f32 %v792, 1.442695
    %v813 = vpow.pop %v812
    %v814 = vmul.f32 %v793, 1.442695
    %v815 = vpow.pop %v814
    %v816 = vmul.f32 %v794, 1.442695
    %v817 = vpow.pop %v816
    %v818 = vmul.f32 %v795, 1.442695
    %v819 = vpow.pop %v818
    %v820 = vmul.f32 %v796, 1.442695
    %v821 = vpow.pop %v820
    %v822 = vmul.f32 %v797, 1.442695
    %v823 = vpow.pop %v822
    %v824 = vmul.f32 %v798, 1.442695
    %v825 = vpow.pop %v824
    %v826 = vmul.f32 %v799, 1.442695
    %v827 = vpow.pop %v826
    %v828 = vmul.f32 %v800, 1.442695
    %v829 = vpow.pop %v828
    %v830 = vmul.f32 %v801, 1.442695
    %v831 = vpow.pop %v830
    %v832 = vmul.f32 %v802, 1.442695
    %v833 = vpow.pop %v832
    %v834 = vmul.f32 %v803, 1.442695
    %v835 = vpow.pop %v834
    %v836 = vadd.f32 %v805, 1.0
    %v837 = vadd.f32 %v807, 1.0
    %v838 = vadd.f32 %v809, 1.0
    %v839 = vadd.f32 %v811, 1.0
    %v840 = vadd.f32 %v813, 1.0
    %v841 = vadd.f32 %v815, 1.0
    %v842 = vadd.f32 %v817, 1.0
    %v843 = vadd.f32 %v819, 1.0
    %v844 = vadd.f32 %v821, 1.0
    %v845 = vadd.f32 %v823, 1.0
    %v846 = vadd.f32 %v825, 1.0
    %v847 = vadd.f32 %v827, 1.0
    %v848 = vadd.f32 %v829, 1.0
    %v849 = vadd.f32 %v831, 1.0
    %v850 = vadd.f32 %v833, 1.0
    %v851 = vadd.f32 %v835, 1.0
    %v852 = vrcp.pop %v836
    %v853 = vmul.f32 1.0, %v852
    %v854 = vrcp.pop %v837
    %v855 = vmul.f32 1.0, %v854
    %v856 = vrcp.pop %v838
    %v857 = vmul.f32 1.0, %v856
    %v858 = vrcp.pop %v839
    %v859 = vmul.f32 1.0, %v858
    %v860 = vrcp.pop %v840
    %v861 = vmul.f32 1.0, %v860
    %v862 = vrcp.pop %v841
    %v863 = vmul.f32 1.0, %v862
    %v864 = vrcp.pop %v842
    %v865 = vmul.f32 1.0, %v864
    %v866 = vrcp.pop %v843
    %v867 = vmul.f32 1.0, %v866
    %v868 = vrcp.pop %v844
    %v869 = vmul.f32 1.0, %v868
    %v870 = vrcp.pop %v845
    %v871 = vmul.f32 1.0, %v870
    %v872 = vrcp.pop %v846
    %v873 = vmul.f32 1.0, %v872
    %v874 = vrcp.pop %v847
    %v875 = vmul.f32 1.0, %v874
    %v876 = vrcp.pop %v848
    %v877 = vmul.f32 1.0, %v876
    %v878 = vrcp.pop %v849
    %v879 = vmul.f32 1.0, %v878
    %v880 = vrcp.pop %v850
    %v881 = vmul.f32 1.0, %v880
    %v882 = vrcp.pop %v851
    %v883 = vmul.f32 1.0, %v882
    %vm884 = vcmask 7168
    %885 = vst.msk [vmem:[%s5] sm:$0xff] %vm884, %v853
    %886 = vst.msk [vmem:[%s5 + $0x8] sm:$0xff] %vm884, %v855
    %887 = vst.msk [vmem:[%s5 + $0x10] sm:$0xff] %vm884, %v857
    %888 = vst.msk [vmem:[%s5 + $0x18] sm:$0xff] %vm884, %v859
    %889 = vst.msk [vmem:[%s5 + $0x20] sm:$0xff] %vm884, %v861
    %890 = vst.msk [vmem:[%s5 + $0x28] sm:$0xff] %vm884, %v863
    %891 = vst.msk [vmem:[%s5 + $0x30] sm:$0xff] %vm884, %v865
    %892 = vst.msk [vmem:[%s5 + $0x38] sm:$0xff] %vm884, %v867
    %893 = vst.msk [vmem:[%s5 + $0x40] sm:$0xff] %vm884, %v869
    %894 = vst.msk [vmem:[%s5 + $0x48] sm:$0xff] %vm884, %v871
    %895 = vst.msk [vmem:[%s5 + $0x50] sm:$0xff] %vm884, %v873
    %896 = vst.msk [vmem:[%s5 + $0x58] sm:$0xff] %vm884, %v875
    %897 = vst.msk [vmem:[%s5 + $0x60] sm:$0xff] %vm884, %v877
    %898 = vst.msk [vmem:[%s5 + $0x68] sm:$0xff] %vm884, %v879
    %899 = vst.msk [vmem:[%s5 + $0x70] sm:$0xff] %vm884, %v881
    %900 = vst.msk [vmem:[%s5 + $0x78] sm:$0xff] %vm884, %v883
  $region17: #{layer_forward.1} parent=0 // pred_fallthru
    _
  // Predicated region
  $region25: #{layer_forward.1} parent=0 // pred_check
    _
  $region26: #{layer_forward.1} parent=0 // pred_check_branch
    %902 = sbr.rel (0) target = $region28
  $region27: #{layer_forward.1} parent=0 // pred_region
    _
  $region28: #{layer_forward.1} parent=0 // pred_fallthru
    _
  // Predicated region
  $region29: #{layer_forward.1} parent=0 // pred_check
    _
  $region30: #{layer_forward.1} parent=0 // pred_check_branch
    %904 = sbr.rel (0) target = $region32
  $region31: #{layer_forward.1} parent=0 // pred_region
    _
  $region32: #{layer_forward.1} parent=0 // pred_fallthru
    _

</llo_original>
